<compile_context>
chip_gen: v7x
topology: tpu7x:2x2x1
jax: 0.10.0
libtpu: 0.0.40
codegen_flags: <defaults>
</compile_context>

<pallas_src>
import math

import jax
import jax.numpy as jnp
from jax.experimental import pallas as pl
from jax.experimental.pallas import tpu as pltpu


def _standardize_kernel(x_ref, scale_ref, shift_ref, o_ref):
    # x_ref:     (TILE, W)  streamed rows of the (packed) input
    # scale_ref: (1, W)     1/sigma, tiled to the packed width (VMEM-resident)
    # shift_ref: (1, W)     -mu/sigma, tiled to the packed width (VMEM-resident)
    # o_ref:     (TILE, W)  output rows
    o_ref[...] = (x_ref[...] * scale_ref[...] + shift_ref[...]).astype(o_ref.dtype)


def standardize_transform(x, mu, sigma, *, tile_rows=2048):
    """Computes (x - mu) / sigma along the last axis of x via a Pallas kernel.

    Args:
      x:     (..., d) array to standardize.
      mu:    (d,) per-feature mean (buffer from StandardizeTransform).
      sigma: (d,) per-feature std  (buffer from StandardizeTransform).
      tile_rows: rows of the packed 2-D view per grid step (~1 MiB tiles).
    Returns:
      (..., d) array, same dtype as x.
    """
    d = x.shape[-1]
    lead = x.shape[:-1]
    n = math.prod(lead) if lead else 1

    scale = (1.0 / sigma).astype(jnp.float32)
    shift = (-mu * scale).astype(jnp.float32)

    # Lane-dense repack: fold several d-wide rows into one 128-wide row so every
    # vector store uses all 128 lanes (biggest single lever for a mem-bound op).
    if d < 128 and 128 % d == 0 and (n * d) % 128 == 0:
        reps = 128 // d
        width = 128
        rows = (n * d) // 128
        scale2 = jnp.tile(scale, reps).reshape(1, width)
        shift2 = jnp.tile(shift, reps).reshape(1, width)
    else:
        width = d
        rows = n
        scale2 = scale.reshape(1, width)
        shift2 = shift.reshape(1, width)
    x2 = x.reshape(rows, width)

    # Row tile: large for HBM-roofline pipelining; multiple of 8 sublanes, or the
    # whole array when it is small enough to be a single block.
    if rows <= tile_rows:
        tile = rows
    else:
        tile = max(8, (tile_rows // 8) * 8)
    grid = (pl.cdiv(rows, tile),)

    dtype_bytes = jnp.dtype(x.dtype).itemsize
    cost = pl.CostEstimate(
        flops=2 * rows * width,
        bytes_accessed=2 * rows * width * dtype_bytes + 2 * width * 4,
        transcendentals=0,
    )

    out = pl.pallas_call(
        _standardize_kernel,
        out_shape=jax.ShapeDtypeStruct((rows, width), x.dtype),
        grid_spec=pltpu.PrefetchScalarGridSpec(
            num_scalar_prefetch=0,
            grid=grid,
            in_specs=[
                pl.BlockSpec((tile, width), lambda i: (i, 0)),   # streamed rows
                pl.BlockSpec((1, width), lambda i: (0, 0)),      # scale, resident
                pl.BlockSpec((1, width), lambda i: (0, 0)),      # shift, resident
            ],
            out_specs=pl.BlockSpec((tile, width), lambda i: (i, 0)),
        ),
        compiler_params=pltpu.CompilerParams(
            # Rows are independent: lets v7x shard the grid across its 2
            # TensorCores; harmless (no-op) on v5e/v6e.
            dimension_semantics=("parallel",),
        ),
        cost_estimate=cost,
    )(x2, scale2, shift2)

    return out.reshape(*lead, d)


if __name__ == "__main__":
    key = jax.random.PRNGKey(0)
    k_train, k_x = jax.random.split(key, 2)

    d = 32
    # "Training" data used by StandardizeTransform.__init__ to build mu / sigma.
    x_train = jax.random.normal(k_train, (64, d), dtype=jnp.float32) * 2.0 + 0.5
    mu = x_train.mean(axis=0)
    sigma = jnp.std(x_train, axis=0, ddof=1)  # torch.Tensor.std default is unbiased

    # Batch to transform: (..., d) with leading dims (batch, seq).
    batch, seq = 2, 8
    x = jax.random.normal(k_x, (batch, seq, d), dtype=jnp.float32) * 2.0 + 0.5

    y = standardize_transform(x, mu, sigma)
    jax.block_until_ready(y)

    # Reference check against plain JAX: (x - mu) / sigma broadcast over leading dims.
    y_ref = (x - mu) / sigma
    assert y.shape == x.shape
    assert jnp.allclose(y, y_ref, atol=1e-5, rtol=1e-5), float(jnp.max(jnp.abs(y - y_ref)))

    print("KERNEL_OK")
</pallas_src>

<mosaic_0001>
module attributes {stable_mosaic.version = 11 : i64} {
  func.func @_standardize_kernel(%arg0: i32, %arg1: memref<4x128xf32, #tpu.memory_space<vmem>>, %arg2: memref<1x128xf32, #tpu.memory_space<vmem>>, %arg3: memref<1x128xf32, #tpu.memory_space<vmem>>, %arg4: memref<4x128xf32, #tpu.memory_space<vmem>>) attributes {dimension_semantics = [#tpu.dimension_semantics<parallel>], iteration_bounds = array<i64: 1>, scalar_prefetch = 0 : i64, scratch_operands = 0 : i64, tpu.core_type = #tpu.core_type<tc>, window_params = [{transform_indices = @transform_0, window_bounds = array<i64: 4, 128>}, {pipeline_mode = #tpu.pipeline_mode<synchronous>, transform_indices = @transform_1, window_bounds = array<i64: 1, 128>}, {pipeline_mode = #tpu.pipeline_mode<synchronous>, transform_indices = @transform_2, window_bounds = array<i64: 1, 128>}, {transform_indices = @transform_3, window_bounds = array<i64: 4, 128>}]} {
    %c0 = arith.constant 0 : index
    %c0_0 = arith.constant 0 : index
    %0 = vector.load %arg1[%c0, %c0_0] : memref<4x128xf32, #tpu.memory_space<vmem>>, vector<4x128xf32>
    %c0_1 = arith.constant 0 : index
    %c0_2 = arith.constant 0 : index
    %1 = vector.load %arg2[%c0_1, %c0_2] : memref<1x128xf32, #tpu.memory_space<vmem>>, vector<1x128xf32>
    %2 = vector.broadcast %1 : vector<1x128xf32> to vector<4x128xf32>
    %3 = arith.mulf %0, %2 : vector<4x128xf32>
    %c0_3 = arith.constant 0 : index
    %c0_4 = arith.constant 0 : index
    %4 = vector.load %arg3[%c0_3, %c0_4] : memref<1x128xf32, #tpu.memory_space<vmem>>, vector<1x128xf32>
    %5 = vector.broadcast %4 : vector<1x128xf32> to vector<4x128xf32>
    %6 = arith.addf %3, %5 : vector<4x128xf32>
    %c0_5 = arith.constant 0 : index
    %c0_6 = arith.constant 0 : index
    %7 = vector.load %arg4[%c0_5, %c0_6] : memref<4x128xf32, #tpu.memory_space<vmem>>, vector<4x128xf32>
    tpu.vector_store %arg4[%c0_5, %c0_6], %6 {strides = array<i32>} : memref<4x128xf32, #tpu.memory_space<vmem>>, vector<4x128xf32>,
    return
  }
  func.func @transform_0(%arg0: i32) -> (i32, i32) {
    %c0_i32 = arith.constant 0 : i32
    %c0_i32_0 = arith.constant 0 : i32
    return %arg0, %c0_i32 : i32, i32
  }
  func.func @transform_1(%arg0: i32) -> (i32, i32) {
    %c0_i32 = arith.constant 0 : i32
    %c0_i32_0 = arith.constant 0 : i32
    %c0_i32_1 = arith.constant 0 : i32
    return %c0_i32, %c0_i32_0 : i32, i32
  }
  func.func @transform_2(%arg0: i32) -> (i32, i32) {
    %c0_i32 = arith.constant 0 : i32
    %c0_i32_0 = arith.constant 0 : i32
    %c0_i32_1 = arith.constant 0 : i32
    return %c0_i32, %c0_i32_0 : i32, i32
  }
  func.func @transform_3(%arg0: i32) -> (i32, i32) {
    %c0_i32 = arith.constant 0 : i32
    %c0_i32_0 = arith.constant 0 : i32
    return %arg0, %c0_i32 : i32, i32
  }
}

</mosaic_0001>

<llo_original>
// kernel: tpu_custom_call.1
$region0: #{tpu_custom_call.1}
  #allocation0 [shape = 'u32[]', space=smem, size = 0x4, offset = 0x4, fixed_abs, tag = 'smem constant byte address 0x4 - core index']
  #allocation1 [shape = 'u32[144,128]{1,0:T(1,128)}', space=vmem, size = 0x12000, scoped, tag = 'internal scratch']
  %s0 = inlined_call_operand.hbm [shape: f32[4,128], index: 0, kind: input, shape index: {}]
  %s1 = inlined_call_operand.vmem [shape: f32[1,128], index: 1, kind: input, shape index: {}]
  %s2 = inlined_call_operand.vmem [shape: f32[1,128], index: 2, kind: input, shape index: {}]
  %s3 = inlined_call_operand.hbm [shape: f32[4,128], index: 3, kind: output, shape index: {}]
  %s4 = sld [smem:[#allocation0]]
  $region26: #{tpu_custom_call.1} parent=0
    _
  %s6 = ssub.s32 1, %s4
  %s7 = scalar_select 0, %s6, %s4
  $region1: #{tpu_custom_call.1} parent=0
    #allocation2 [shape = 'u8[2048]{0}', space=vmem, size = 0x800, scoped, tag = 'input window, operand 0, single buffered']
    #allocation3 [shape = 's32[1]{0}', space=sflag, size = 0x4, scoped, tag = 'scoped memory for tpu_custom_call.1']
    #allocation4 [shape = 's32[1]{0}', space=sflag, size = 0x4, scoped, tag = 'scoped memory for tpu_custom_call.1']
    #allocation5 [shape = 'u8[2048]{0}', space=vmem, size = 0x800, scoped, tag = 'output window, operand 0, single buffered']
    %8 = vsyncpa [#allocation3], 0
    %9 = vsyncpa [#allocation4], 0
    // Predicated region
    $region2: #{tpu_custom_call.1} parent=1 // pred_check
      _
    $region3: #{tpu_custom_call.1} parent=1 // pred_check_branch
      %11 = sbr.rel (0) target = $region5
    $region4: #{tpu_custom_call.1} parent=1 // pred_region
      %s13 = ssub.s32 64, 64
      %14 = vsyncadd [#allocation3], %s13
      %s16 = sshll.u32 [#allocation2], 4
      %s17 = int_to_ptr.vmem [resolvable:$true] %s16
      %19 = dma.hbm_to_vmem [thread:$0]  %s0, 64, %s17, [#allocation3]
    $region5: #{tpu_custom_call.1} parent=1 // pred_fallthru
      _
    // Predicated region
    $region6: #{tpu_custom_call.1} parent=1 // pred_check
      _
    $region7: #{tpu_custom_call.1} parent=1 // pred_check_branch
      %21 = sbr.rel (0) target = $region9
    $region8: #{tpu_custom_call.1} parent=1 // pred_region
      _
    $region9: #{tpu_custom_call.1} parent=1 // pred_fallthru
      _
    // Predicated region
    $region10: #{tpu_custom_call.1} parent=1 // pred_check
      _
    $region11: #{tpu_custom_call.1} parent=1 // pred_check_branch
      %23 = sbr.rel (0) target = $region13
    $region12: #{tpu_custom_call.1} parent=1 // pred_region
      _
    $region13: #{tpu_custom_call.1} parent=1 // pred_fallthru
      _
    // Predicated region
    $region14: #{tpu_custom_call.1} parent=1 // pred_check
      _
    $region15: #{tpu_custom_call.1} parent=1 // pred_check_branch
      %25 = sbr.rel (0) target = $region17
    $region16: #{tpu_custom_call.1} parent=1 // pred_region
      %26 = dma.done [#allocation3], 64
    $region17: #{tpu_custom_call.1} parent=1 // pred_fallthru
      _
    %v27 = vld [vmem:[#allocation2] sm:$0xf]
    %v28 = vld [vmem:[%s1] sm:$0x1]
    %v30 = vlaneseq
    %v31 = vshrl.u32 %v30, 7
    %v32 = vsub.s32 0, %v31
    %v33 = vrot.slane %v28, %v32
    %v35 = vmul.f32 %v27, %v33
    %v36 = vld [vmem:[%s2] sm:$0x1]
    %v38 = vlaneseq
    %v39 = vshrl.u32 %v38, 7
    %v40 = vsub.s32 0, %v39
    %v41 = vrot.slane %v36, %v40
    %v43 = vadd.f32 %v35, %v41
    %44 = vst [vmem:[#allocation5] sm:$0xf] %v43
    // Predicated region
    $region18: #{tpu_custom_call.1} parent=1 // pred_check
      _
    $region19: #{tpu_custom_call.1} parent=1 // pred_check_branch
      %46 = sbr.rel (0) target = $region21
    $region20: #{tpu_custom_call.1} parent=1 // pred_region
      %s48 = ssub.s32 64, 64
      %49 = vsyncadd [#allocation4], %s48
      %s51 = sshll.u32 [#allocation5], 4
      %s52 = int_to_ptr.vmem [resolvable:$true] %s51
      %54 = dma.vmem_to_hbm [thread:$0]  %s52, 64, %s3, [#allocation4]
    $region21: #{tpu_custom_call.1} parent=1 // pred_fallthru
      _
    // Predicated region
    $region22: #{tpu_custom_call.1} parent=1 // pred_check
      _
    $region23: #{tpu_custom_call.1} parent=1 // pred_check_branch
      %56 = sbr.rel (0) target = $region25
    $region24: #{tpu_custom_call.1} parent=1 // pred_region
      %57 = dma.done [#allocation4], 64
    $region25: #{tpu_custom_call.1} parent=1 // pred_fallthru
      _
    %58 = vsyncpa [#allocation3], 1
    %59 = vsyncpa [#allocation4], 1

</llo_original>
